<compile_context>
chip_gen: v7x
topology: tpu7x:2x2x1
jax: 0.10.0
libtpu: 0.0.40
codegen_flags: <defaults>
</compile_context>

<pallas_src>
import functools

import jax
import jax.numpy as jnp
from jax import lax
from jax.experimental import pallas as pl
from jax.experimental.pallas import tpu as pltpu

LANE = 128                        # TPU lane width
BLOCK_BYTES = 4 * 1024 * 1024     # HBM->VMEM DMA block per input buffer
CHUNK_ELEMS = 32 * 1024           # in-kernel compute chunk (f32: ~32 vregs/value)
NUM_CORES = 2                     # shard streaming across 2 TCs (v7x megacore)
MIN_KERNEL_ELEMS = 1024           # below this, plain jnp is cheaper
VMEM_LIMIT = 32 * 1024 * 1024     # explicit scoped-VMEM limit (safe on v5e/v6e/v7x)


def _bce_sum_jnp(a, p):
    """Plain-jnp sum of the BCE-style loss (tiny inputs / ragged tails only)."""
    a = a.astype(jnp.float32)
    p = p.astype(jnp.float32)
    return jnp.sum(-(a * jnp.log(jnp.clip(p, 1e-5, 1.0))
                     + (1.0 - a) * jnp.log(jnp.clip(1.0 - p, 1e-5, 1.0))))


def _pick_width(n):
    """Best lane width: 128 if n % 128 == 0, else the divisor of n in [64, 1024]
    with the highest lane utilization (valid lanes / padded lanes)."""
    if n % LANE == 0:
        return LANE
    best, best_util = None, 0.0
    for c in range(64, min(n, 1024) + 1):
        if n % c:
            continue
        util = c / (-(-c // LANE) * LANE)
        if util > best_util or (util == best_util and (best is None or c > best)):
            best, best_util = c, util
    return best


def _bce_partial_kernel(a_ref, p_ref, out_ref, *, bm, C, R, nb, spc, cm,
                        acc_rows, mask_needed):
    """Accumulate partial loss sums for one (bm, C) block into out_ref."""
    c = pl.program_id(0)          # core axis ("parallel", size 1 or 2)
    i = pl.program_id(1)          # streaming axis ("arbitrary" / reduction)
    gb = c * spc + i              # logical (unclamped) block index

    @pl.when(i == 0)
    def _init():
        out_ref[...] = jnp.zeros_like(out_ref)

    n_full = bm // cm             # full compute chunks per block (static)
    rem = bm - n_full * cm        # leftover rows (static; only when nb == 1)

    def chunk_sum(rows, row0, masked):
        a = a_ref[pl.ds(row0, rows), :].astype(jnp.float32)
        p = p_ref[pl.ds(row0, rows), :].astype(jnp.float32)
        lp = jnp.log(jnp.clip(p, 1e-5, 1.0))
        lq = jnp.log(jnp.clip(1.0 - p, 1e-5, 1.0))
        v = a * (lq - lp) - lq            # == -(a*lp + (1-a)*lq), fewer VPU ops
        if masked:
            row = gb * bm + row0 + lax.broadcasted_iota(jnp.int32, (rows, 1), 0)
            # Select, never multiply: masked rows may hold NaN/Inf garbage.
            v = jnp.where(row < R, v, 0.0)
        if acc_rows == 8:
            # rows % 8 == 0 by construction: pure vreg-wise VPU adds.
            return v.reshape(rows // 8, 8, C).sum(axis=0)
        return v.sum(axis=0, keepdims=True)

    def block_sum(masked):
        acc = jnp.zeros((acc_rows, C), jnp.float32)
        if n_full > 0:
            def body(j, acc):
                off = pl.multiple_of(j * cm, cm)
                return acc + chunk_sum(cm, off, masked)
            acc = lax.fori_loop(0, n_full, body, acc)
        if rem > 0:
            acc = acc + chunk_sum(rem, n_full * cm, masked)
        return acc

    if not mask_needed:
        out_ref[...] += block_sum(False)
    else:
        @pl.when(gb < nb - 1)
        def _full_blocks():
            out_ref[...] += block_sum(False)

        @pl.when(gb >= nb - 1)
        def _last_or_phantom():
            out_ref[...] += block_sum(True)


def _loss_sum_2d(a2, p2):
    """Pallas partial sum of the element-wise loss over a 2-D (R, C) view."""
    R, C = a2.shape
    itemsize = max(a2.dtype.itemsize, p2.dtype.itemsize)

    # Compute-chunk rows: ~CHUNK_ELEMS elements, a multiple of 32 rows so the
    # DMA block stays tile-legal for f32 / bf16 / int8 inputs.
    cm0 = max(32, (CHUNK_ELEMS // C) // 32 * 32)

    # DMA-block rows: ~BLOCK_BYTES per input buffer (native dtype), a multiple
    # of the compute chunk.  2 inputs x 2 pipeline buffers x 4 MiB = 16 MiB.
    bm_cap = max(cm0, (BLOCK_BYTES // (C * itemsize)) // cm0 * cm0)

    bm = R if R <= bm_cap else bm_cap
    nb = -(-R // bm)                          # number of row blocks
    ncores = NUM_CORES if nb >= NUM_CORES else 1
    spc = -(-nb // ncores)                    # grid steps per core
    # Mask only needed for a partial last block or phantom (clamped) steps.
    mask_needed = (nb * bm != R) or (ncores * spc != nb)

    cm = min(cm0, bm)
    rem = bm % cm
    acc_rows = 8 if (cm % 8 == 0 and rem % 8 == 0) else 1

    def in_map(c, i):
        # Phantom steps (odd nb on 2 cores) re-read the last real block; the
        # in-kernel row mask zeroes their contribution.
        return (jnp.minimum(c * spc + i, nb - 1), 0)

    kernel = functools.partial(
        _bce_partial_kernel, bm=bm, C=C, R=R, nb=nb, spc=spc, cm=cm,
        acc_rows=acc_rows, mask_needed=mask_needed)

    n = R * C
    cost = pl.CostEstimate(
        flops=8 * n,                          # ~8 VPU ops / element
        transcendentals=2 * n,                # two logs / element
        bytes_accessed=n * (a2.dtype.itemsize + p2.dtype.itemsize)
        + ncores * acc_rows * C * 4,
    )

    partials = pl.pallas_call(
        kernel,
        out_shape=jax.ShapeDtypeStruct((ncores, acc_rows, C), jnp.float32),
        grid_spec=pltpu.PrefetchScalarGridSpec(
            num_scalar_prefetch=0,
            grid=(ncores, spc),
            in_specs=[
                pl.BlockSpec((bm, C), in_map),
                pl.BlockSpec((bm, C), in_map),
            ],
            out_specs=pl.BlockSpec((None, acc_rows, C), lambda c, i: (c, 0, 0)),
        ),
        compiler_params=pltpu.CompilerParams(
            dimension_semantics=("parallel", "arbitrary"),
            vmem_limit_bytes=VMEM_LIMIT),
        cost_estimate=cost,
    )(a2, p2)

    return jnp.sum(partials)


@jax.jit
def implicit_attention_loss(attention, implied_attention):
    """Pallas equivalent of ImplicitAttentionLoss.forward (scalar f32 mean)."""
    assert attention.shape == implied_attention.shape
    n = attention.size
    a = attention.reshape(-1)
    p = implied_attention.reshape(-1)

    if n < MIN_KERNEL_ELEMS:
        # Tiny inputs: not worth a kernel launch.
        return _bce_sum_jnp(a, p) / n

    C = _pick_width(n)
    if C is not None:
        # Zero-copy path: (R, C) is a pure reshape of the original buffers.
        return _loss_sum_2d(a.reshape(n // C, C), p.reshape(n // C, C)) / n

    # Pathological sizes (no usable 2-D factorization, e.g. n prime): run the
    # kernel on the 128-aligned prefix (costs one copy of each input -- rare)
    # and fold the <128-element tail in with plain jnp.
    n_main = (n // LANE) * LANE
    main = _loss_sum_2d(a[:n_main].reshape(n_main // LANE, LANE),
                        p[:n_main].reshape(n_main // LANE, LANE))
    tail = _bce_sum_jnp(a[n_main:], p[n_main:])
    return (main + tail) / n


def _reference(attention, implied_attention):
    """Plain-JAX reference matching the PyTorch forward exactly."""
    a = attention.astype(jnp.float32)
    p = implied_attention.astype(jnp.float32)
    loss = -(a * jnp.log(jnp.clip(p, 1e-5, 1.0))
             + (1.0 - a) * jnp.log(jnp.clip(1.0 - p, 1e-5, 1.0)))
    return loss.mean()


if __name__ == "__main__":
    key = jax.random.PRNGKey(0)
    keys = jax.random.split(key, 6)

    def check(shape, ka, kp, rtol=1e-5, atol=1e-6):
        att = jax.random.uniform(ka, shape, dtype=jnp.float32)
        imp = jax.random.uniform(kp, shape, dtype=jnp.float32)
        out = jax.block_until_ready(implicit_attention_loss(att, imp))
        ref = _reference(att, imp)
        assert jnp.allclose(out, ref, rtol=rtol, atol=atol), (shape, out, ref)

    # Attention maps: (batch=2, channels=4, spatial=16x16) -> n = 2048 (aligned).
    check((2, 4, 16, 16), keys[0], keys[1])

    # Misaligned size (n = 24000, not a multiple of 128): exercises the
    # zero-copy divisor-based (24, 1000) layout -- no hidden input copies.
    check((3, 5, 40, 40), keys[2], keys[3])

    # Larger map (n = 1,152,000 -> R = 9000 rows of 128): exercises multi-block
    # streaming, the chunked fori_loop, the gated partial-last-block mask and
    # the 2-core grid split.  Looser rtol: f32 reduction-order differences.
    check((2, 4, 96, 1500), keys[4], keys[5], rtol=1e-4, atol=1e-6)

    print("KERNEL_OK")
</pallas_src>

<mosaic_0001>
module attributes {stable_mosaic.version = 11 : i64} {
  func.func @_bce_partial_kernel(%arg0: i32, %arg1: i32, %arg2: memref<16x128xf32, #tpu.memory_space<vmem>>, %arg3: memref<16x128xf32, #tpu.memory_space<vmem>>, %arg4: memref<1x8x128xf32, #tpu.memory_space<vmem>>) attributes {dimension_semantics = [#tpu.dimension_semantics<parallel>, #tpu.dimension_semantics<arbitrary>], iteration_bounds = array<i64: 1, 1>, scalar_prefetch = 0 : i64, scratch_operands = 0 : i64, tpu.core_type = #tpu.core_type<tc>, window_params = [{transform_indices = @transform_0, window_bounds = array<i64: 16, 128>}, {transform_indices = @transform_1, window_bounds = array<i64: 16, 128>}, {transform_indices = @transform_2, window_bounds = array<i64: 1, 8, 128>}]} {
    %c0_i32 = arith.constant 0 : i32
    %0 = arith.cmpi eq, %arg1, %c0_i32 : i32
    %1 = arith.extui %0 : i1 to i32
    %c0_i32_0 = arith.constant 0 : i32
    %2 = arith.cmpi ne, %1, %c0_i32_0 : i32
    scf.if %2 {
      %cst_15 = arith.constant 0.000000e+00 : f32
      %34 = vector.broadcast %cst_15 : f32 to vector<8x128xf32>
      %c0_16 = arith.constant 0 : index
      %c0_17 = arith.constant 0 : index
      %c0_18 = arith.constant 0 : index
      %35 = vector.load %arg4[%c0_16, %c0_17, %c0_18] : memref<1x8x128xf32, #tpu.memory_space<vmem>>, vector<1x8x128xf32>
      %36 = vector.shape_cast %35 : vector<1x8x128xf32> to vector<8x128xf32>
      %37 = vector.shape_cast %34 : vector<8x128xf32> to vector<1x8x128xf32>
      tpu.vector_store %arg4[%c0_16, %c0_17, %c0_18], %37 {strides = array<i32>} : memref<1x8x128xf32, #tpu.memory_space<vmem>>, vector<1x8x128xf32>,
    } else {
    }
    %c0 = arith.constant 0 : index
    %c0_1 = arith.constant 0 : index
    %c0_2 = arith.constant 0 : index
    %3 = vector.load %arg4[%c0, %c0_1, %c0_2] : memref<1x8x128xf32, #tpu.memory_space<vmem>>, vector<1x8x128xf32>
    %4 = vector.shape_cast %3 : vector<1x8x128xf32> to vector<8x128xf32>
    %cst = arith.constant 0.000000e+00 : f32
    %5 = vector.broadcast %cst : f32 to vector<8x128xf32>
    %c0_i32_3 = arith.constant 0 : i32
    %c16_i32 = arith.constant 16 : i32
    %6 = arith.muli %c0_i32_3, %c16_i32 : i32
    %7 = tpu.assume_multiple %6, 16 : i32
    %8 = arith.index_cast %7 : i32 to index
    %c0_4 = arith.constant 0 : index
    %9 = vector.load %arg2[%8, %c0_4] : memref<16x128xf32, #tpu.memory_space<vmem>>, vector<16x128xf32>
    %10 = arith.index_cast %7 : i32 to index
    %c0_5 = arith.constant 0 : index
    %11 = vector.load %arg3[%10, %c0_5] : memref<16x128xf32, #tpu.memory_space<vmem>>, vector<16x128xf32>
    %cst_6 = arith.constant 9.99999974E-6 : f32
    %cst_7 = arith.constant 1.000000e+00 : f32
    %12 = vector.broadcast %cst_6 : f32 to vector<16x128xf32>
    %13 = arith.maximumf %12, %11 : vector<16x128xf32>
    %14 = vector.broadcast %cst_7 : f32 to vector<16x128xf32>
    %15 = arith.minimumf %14, %13 : vector<16x128xf32>
    %16 = math.log %15 : vector<16x128xf32>
    %cst_8 = arith.constant 1.000000e+00 : f32
    %17 = vector.broadcast %cst_8 : f32 to vector<16x128xf32>
    %18 = arith.subf %17, %11 : vector<16x128xf32>
    %cst_9 = arith.constant 9.99999974E-6 : f32
    %cst_10 = arith.constant 1.000000e+00 : f32
    %19 = vector.broadcast %cst_9 : f32 to vector<16x128xf32>
    %20 = arith.maximumf %19, %18 : vector<16x128xf32>
    %21 = vector.broadcast %cst_10 : f32 to vector<16x128xf32>
    %22 = arith.minimumf %21, %20 : vector<16x128xf32>
    %23 = math.log %22 : vector<16x128xf32>
    %24 = arith.subf %23, %16 : vector<16x128xf32>
    %25 = arith.mulf %9, %24 : vector<16x128xf32>
    %26 = arith.subf %25, %23 : vector<16x128xf32>
    %27 = vector.shape_cast %26 : vector<16x128xf32> to vector<2x8x128xf32>
    %cst_11 = arith.constant dense<0.000000e+00> : vector<8x128xf32>
    %28 = vector.multi_reduction <add>, %27, %cst_11 [0] : vector<2x8x128xf32> to vector<8x128xf32>
    %29 = arith.addf %5, %28 : vector<8x128xf32>
    %c1_i32 = arith.constant 1 : i32
    %30 = arith.addf %4, %29 : vector<8x128xf32>
    %c0_12 = arith.constant 0 : index
    %c0_13 = arith.constant 0 : index
    %c0_14 = arith.constant 0 : index
    %31 = vector.load %arg4[%c0_12, %c0_13, %c0_14] : memref<1x8x128xf32, #tpu.memory_space<vmem>>, vector<1x8x128xf32>
    %32 = vector.shape_cast %31 : vector<1x8x128xf32> to vector<8x128xf32>
    %33 = vector.shape_cast %30 : vector<8x128xf32> to vector<1x8x128xf32>
    tpu.vector_store %arg4[%c0_12, %c0_13, %c0_14], %33 {strides = array<i32>} : memref<1x8x128xf32, #tpu.memory_space<vmem>>, vector<1x8x128xf32>,
    return
  }
  func.func @transform_0(%arg0: i32, %arg1: i32) -> (i32, i32) {
    %c1_i32 = arith.constant 1 : i32
    %0 = arith.muli %arg0, %c1_i32 : i32
    %1 = arith.addi %0, %arg1 : i32
    %c0_i32 = arith.constant 0 : i32
    %2 = arith.minsi %1, %c0_i32 : i32
    %c0_i32_0 = arith.constant 0 : i32
    %c0_i32_1 = arith.constant 0 : i32
    return %2, %c0_i32_0 : i32, i32
  }
  func.func @transform_1(%arg0: i32, %arg1: i32) -> (i32, i32) {
    %c1_i32 = arith.constant 1 : i32
    %0 = arith.muli %arg0, %c1_i32 : i32
    %1 = arith.addi %0, %arg1 : i32
    %c0_i32 = arith.constant 0 : i32
    %2 = arith.minsi %1, %c0_i32 : i32
    %c0_i32_0 = arith.constant 0 : i32
    %c0_i32_1 = arith.constant 0 : i32
    return %2, %c0_i32_0 : i32, i32
  }
  func.func @transform_2(%arg0: i32, %arg1: i32) -> (i32, i32, i32) {
    %c0_i32 = arith.constant 0 : i32
    %c0_i32_0 = arith.constant 0 : i32
    %c0_i32_1 = arith.constant 0 : i32
    return %arg0, %c0_i32, %c0_i32_0 : i32, i32, i32
  }
}

</mosaic_0001>

<llo_original>
// kernel: implicit_attention_loss.1
$region0: #{implicit_attention_loss.1}
  #allocation0 [shape = 'u32[]', space=smem, size = 0x4, offset = 0x4, fixed_abs, tag = 'smem constant byte address 0x4 - core index']
  #allocation1 [shape = 'u32[144,128]{1,0:T(1,128)}', space=vmem, size = 0x12000, scoped, tag = 'internal scratch']
  %s0 = inlined_call_operand.vmem [shape: f32[16,128], index: 0, kind: input, shape index: {}]
  %s1 = inlined_call_operand.vmem [shape: f32[16,128], index: 1, kind: input, shape index: {}]
  %s2 = inlined_call_operand.vmem [shape: f32[1,8,128], index: 2, kind: output, shape index: {}]
  %s3 = sld [smem:[#allocation0]]
  $region22: #{implicit_attention_loss.1} parent=0
    _
  %s5 = ssub.s32 1, %s3
  %s6 = scalar_select 0, %s5, %s3
  // Predicated region
  $region2: #{implicit_attention_loss.1} parent=0 // pred_check
    _
  $region3: #{implicit_attention_loss.1} parent=0 // pred_check_branch
    %8 = sbr.rel (0) target = $region5
  $region4: #{implicit_attention_loss.1} parent=0 // pred_region
    %s9 = sadd.s32 0, 0
    %p10 = scmp.lt.s32.totalorder %s9, 0
    %s11 = scalar_select %p10, %s9, 0
    %s12 = smul.u32 2, %s11
    %p13 = scmp.lt.s32.totalorder %s12, 1
    %s14 = scalar_select %p13, %s12, 1
    %s15 = smul.addr %s14, 8
    %s16 = scalar_lea.vmem %s0, %s15
    %s17 = sadd.s32 0, 0
    %p18 = scmp.lt.s32.totalorder %s17, 0
    %s19 = scalar_select %p18, %s17, 0
    %s20 = smul.u32 2, %s19
  $region5: #{implicit_attention_loss.1} parent=0 // pred_fallthru
    _
  // Predicated region
  $region6: #{implicit_attention_loss.1} parent=0 // pred_check
    _
  $region7: #{implicit_attention_loss.1} parent=0 // pred_check_branch
    %22 = sbr.rel (0) target = $region9
  $region8: #{implicit_attention_loss.1} parent=0 // pred_region
    %s23 = sadd.s32 0, 0
    %p24 = scmp.lt.s32.totalorder %s23, 0
    %s25 = scalar_select %p24, %s23, 0
    %s26 = smul.u32 2, %s25
    %p27 = scmp.lt.s32.totalorder %s26, 1
    %s28 = scalar_select %p27, %s26, 1
    %s29 = smul.addr %s28, 8
    %s30 = scalar_lea.vmem %s1, %s29
    %s31 = sadd.s32 0, 0
    %p32 = scmp.lt.s32.totalorder %s31, 0
    %s33 = scalar_select %p32, %s31, 0
    %s34 = smul.u32 2, %s33
  $region9: #{implicit_attention_loss.1} parent=0 // pred_fallthru
    _
  %s35 = sadd.s32 0, 0
  %p36 = scmp.lt.s32.totalorder %s35, 0
  %s37 = scalar_select %p36, %s35, 0
  %s38 = smul.u32 2, %s37
  %p39 = scmp.lt.s32.totalorder %s38, 1
  %s40 = scalar_select %p39, %s38, 1
  %s41 = smul.addr %s40, 8
  %s42 = scalar_lea.vmem %s0, %s41
  %s43 = sadd.s32 0, 0
  %p44 = scmp.lt.s32.totalorder %s43, 0
  %s45 = scalar_select %p44, %s43, 0
  %s46 = smul.u32 2, %s45
  %p47 = scmp.lt.s32.totalorder %s46, 1
  %s48 = scalar_select %p47, %s46, 1
  %s49 = smul.addr %s48, 8
  %s50 = scalar_lea.vmem %s1, %s49
  %s51 = sadd.s32 0, 0
  %p52 = scmp.lt.s32.totalorder %s51, 0
  %s53 = scalar_select %p52, %s51, 0
  %s54 = smul.u32 2, %s53
  %p55 = scmp.lt.s32.totalorder %s54, 1
  %s56 = scalar_select %p55, %s54, 1
  %s57 = smul.addr %s56, 8
  %s58 = scalar_lea.vmem %s0, %s57
  %s59 = sadd.s32 0, 0
  %p60 = scmp.lt.s32.totalorder %s59, 0
  %s61 = scalar_select %p60, %s59, 0
  %s62 = smul.u32 2, %s61
  %s63 = sadd.s32 0, 0
  %p64 = scmp.lt.s32.totalorder %s63, 0
  %s65 = scalar_select %p64, %s63, 0
  %s66 = smul.u32 2, %s65
  %p67 = scmp.lt.s32.totalorder %s66, 1
  %s68 = scalar_select %p67, %s66, 1
  %s69 = smul.addr %s68, 8
  %s70 = scalar_lea.vmem %s1, %s69
  %s71 = sadd.s32 0, 0
  %p72 = scmp.lt.s32.totalorder %s71, 0
  %s73 = scalar_select %p72, %s71, 0
  %s74 = smul.u32 2, %s73
  %p75 = scmp.eq.s32.totalorder 0, 0
  // Predicated region
  $region10: #{implicit_attention_loss.1} parent=0 // pred_check
    %p76 = pneg %p75
  $region11: #{implicit_attention_loss.1} parent=0 // pred_check_branch
    %78 = sbr.rel (%p76) target = $region13
  $region12: #{implicit_attention_loss.1} parent=0 // pred_region
    %79 = vst [vmem:[%s2] sm:$0xff] 0.0
  $region13: #{implicit_attention_loss.1} parent=0 // pred_fallthru
    _
  %v80 = vld [vmem:[%s2] sm:$0xff]
  %v81 = vld [vmem:[%s58] sm:$0xff]
  %v82 = vld [vmem:[%s58 + $0x8] sm:$0xff]
  %v83 = vld [vmem:[%s70] sm:$0xff]
  %v84 = vld [vmem:[%s70 + $0x8] sm:$0xff]
  %v85 = vmax.f32 %v83, 1e-05
  %v86 = vmax.f32 %v84, 1e-05
  %v87 = vmin.f32 %v85, 1.0
  %v88 = vmin.f32 %v86, 1.0
  %v89 = vlog2.pop %v87
  %v90 = vmul.f32 %v89, 0.6931472
  %v91 = vlog2.pop %v88
  %v92 = vmul.f32 %v91, 0.6931472
  %v93 = vsub.f32 1.0, %v83
  %v94 = vsub.f32 1.0, %v84
  %v95 = vmax.f32 %v93, 1e-05
  %v96 = vmax.f32 %v94, 1e-05
  %v97 = vmin.f32 %v95, 1.0
  %v98 = vmin.f32 %v96, 1.0
  %v99 = vlog2.pop %v97
  %v100 = vmul.f32 %v99, 0.6931472
  %v101 = vlog2.pop %v98
  %v102 = vmul.f32 %v101, 0.6931472
  %v103 = vsub.f32 %v100, %v90
  %v104 = vsub.f32 %v102, %v92
  %v105 = vmul.f32 %v81, %v103
  %v106 = vmul.f32 %v82, %v104
  %v107 = vsub.f32 %v105, %v100
  %v108 = vsub.f32 %v106, %v102
  %v109 = vadd.f32 %v107, %v108
  %v110 = vadd.f32 %v109, 0.0
  %v111 = vadd.f32 %v80, %v110
  %112 = vst [vmem:[%s2] sm:$0xff] %v111
  // Predicated region
  $region14: #{implicit_attention_loss.1} parent=0 // pred_check
    _
  $region15: #{implicit_attention_loss.1} parent=0 // pred_check_branch
    %114 = sbr.rel (0) target = $region17
  $region16: #{implicit_attention_loss.1} parent=0 // pred_region
    _
  $region17: #{implicit_attention_loss.1} parent=0 // pred_fallthru
    _
  // Predicated region
  $region18: #{implicit_attention_loss.1} parent=0 // pred_check
    _
  $region19: #{implicit_attention_loss.1} parent=0 // pred_check_branch
    %116 = sbr.rel (0) target = $region21
  $region20: #{implicit_attention_loss.1} parent=0 // pred_region
    _
  $region21: #{implicit_attention_loss.1} parent=0 // pred_fallthru
    _

</llo_original>
